<compile_context>
chip_gen: v7x
topology: tpu7x:2x2x1
jax: 0.10.0
libtpu: 0.0.40
codegen_flags: <defaults>
</compile_context>

<pallas_src>
import functools

import jax
import jax.numpy as jnp
from jax.experimental import pallas as pl
from jax.experimental.pallas import tpu as pltpu

_LANE = 128


# ----------------------------------------------------------------------------
# Pallas kernel
# ----------------------------------------------------------------------------
def _fused_base_ssn_kernel(x_ref, w0_ref, b0_ref, wh_ref, bh_ref, head_ref,
                           *, cout, rank, epsilon, mask_row):
    """Base 1x1 conv + ReLU, one fused matmul for
    [mean; log_diag; cov_factor; aux1; aux2], and the SSN epilogue,
    on a lane-dense (C, tile) pixel block."""
    x = x_ref[...]                                       # (Cin, T) f32
    m = x[mask_row:mask_row + 1, :]                      # (1, T) ROI mask = last channel

    # Base UNet feature conv (1x1) + ReLU. bf16 MXU operands, f32 accumulation.
    f = jnp.dot(w0_ref[...], x.astype(jnp.bfloat16),
                preferred_element_type=jnp.float32) + b0_ref[...]
    f = jnp.maximum(f, 0.0)                              # (Cmid, T) f32

    # Single fused head matmul (all SSN + aux heads share one weight matrix).
    y = jnp.dot(wh_ref[...], f.astype(jnp.bfloat16),
                preferred_element_type=jnp.float32) + bh_ref[...]   # (Chead, T)

    chead = y.shape[0]
    row = jax.lax.broadcasted_iota(jnp.int32, (chead, 1), 0)
    is_diag = jnp.logical_and(row >= cout, row < 2 * cout)
    is_fact = jnp.logical_and(row >= 2 * cout, row < (2 + rank) * cout)

    diag_val = (jnp.exp(y) + epsilon) * m + epsilon      # kept only on diag rows
    out = jnp.where(is_fact, y * m, y)                   # mask the factor rows
    out = jnp.where(is_diag, diag_val, out)              # exp/eps/mask on diag rows
    head_ref[...] = out                                  # mean/aux rows pass through


# ----------------------------------------------------------------------------
# Wrapper
# ----------------------------------------------------------------------------
def fused_base_ssn(x, base_p, ssn_p, *, out_channels, rank, epsilon, tile=8192):
    """Run the fused kernel over x (B, Cin, H, W).

    Returns head (B, (4+rank)*Cout, H*W) f32 with rows ordered
    [mean; cov_diag; cov_factor; aux1; aux2].
    """
    B, Cin, H, W = x.shape
    N = H * W
    Cmid = base_p["w0"].shape[0]

    # Concatenate all 1x1 head convs (SSN mean/logdiag/factor + 2 aux heads)
    # into ONE weight / bias -> one matmul per pixel block.
    w_head = jnp.concatenate(
        [ssn_p["w_mean"], ssn_p["w_logdiag"], ssn_p["w_factor"],
         base_p["aux"][0][0], base_p["aux"][1][0]], axis=0)
    b_head = jnp.concatenate(
        [ssn_p["b_mean"], ssn_p["b_logdiag"], ssn_p["b_factor"],
         base_p["aux"][0][1], base_p["aux"][1][1]], axis=0)
    Chead = w_head.shape[0]

    # Lane tile: as large as reasonable (amortize per-step overhead), clamped
    # to the per-batch pixel count, multiple of 128 lanes.  Ragged last tile
    # is handled by Pallas' masked edge blocks (no host-side padding).
    tile = max(_LANE, min(tile, pl.cdiv(N, _LANE) * _LANE))
    n_blocks = pl.cdiv(N, tile)

    x_cn = x.reshape(B, Cin, N)   # free (contiguous) reshape: pixels on lanes

    head = pl.pallas_call(
        functools.partial(_fused_base_ssn_kernel, cout=out_channels, rank=rank,
                          epsilon=epsilon, mask_row=Cin - 1),
        out_shape=jax.ShapeDtypeStruct((B, Chead, N), jnp.float32),
        grid=(B, n_blocks),
        in_specs=[
            pl.BlockSpec((None, Cin, tile), lambda b, i: (b, 0, i)),   # x block
            pl.BlockSpec((Cmid, Cin), lambda b, i: (0, 0)),            # w0
            pl.BlockSpec((Cmid, 1), lambda b, i: (0, 0)),              # b0
            pl.BlockSpec((Chead, Cmid), lambda b, i: (0, 0)),          # w_head
            pl.BlockSpec((Chead, 1), lambda b, i: (0, 0)),             # b_head
        ],
        out_specs=pl.BlockSpec((None, Chead, tile), lambda b, i: (b, 0, i)),
        compiler_params=pltpu.CompilerParams(
            dimension_semantics=("parallel", "parallel"),
            vmem_limit_bytes=32 * 1024 * 1024),
    )(x_cn,
      base_p["w0"].astype(jnp.bfloat16),
      base_p["b0"].reshape(Cmid, 1).astype(jnp.float32),
      w_head.astype(jnp.bfloat16),
      b_head.reshape(Chead, 1).astype(jnp.float32))
    return head


# ----------------------------------------------------------------------------
# SSN_Wrapped_Deep_Supervision_LLO.forward
# ----------------------------------------------------------------------------
def ssn_wrapped_llo_forward(x, params, ssn_config):
    B, Cin, H, W = x.shape
    Cout = ssn_config["out_channels"]
    rank = ssn_config["rank"]
    eps = ssn_config["epsilon"]
    D = Cout * H * W

    head = fused_base_ssn(x, params["base"], params["ssn"],
                          out_channels=Cout, rank=rank, epsilon=eps)
    # head: (B, (4+rank)*Cout, H*W), rows = [mean; cov_diag; cov_factor; aux1; aux2]

    # ---- SSN distribution parameters (pure reshapes + one tiny transpose) ----
    logit_mean = head[:, :Cout].reshape(B, Cout, H, W)
    mean_flat = head[:, :Cout].reshape(B, D)
    cov_diag = head[:, Cout:2 * Cout].reshape(B, D)
    # factor channel index = r*out_channels + c (matches PyTorch conv ordering)
    cov_factor = head[:, 2 * Cout:(2 + rank) * Cout].reshape(B, rank, D)
    cov_factor = jnp.transpose(cov_factor, (0, 2, 1))                # (B, D, rank)

    ssn_out = {
        "logit_mean": logit_mean,
        "mean_flat": mean_flat,
        "cov_diag": cov_diag,
        "cov_factor": cov_factor,
        # TODO(synk): torch.distributions.LowRankMultivariateNormal /
        # ReshapedDistribution construction has no Pallas equivalent; the
        # distribution parameters are returned instead.
        "distribution": None,
    }

    # ---- deep-supervision auxiliary heads ----
    # 1x1 conv commutes with spatial subsampling, so downsampling the tiny
    # (Cout, N) aux logits is exactly equivalent to conv on downsampled feats.
    a1 = head[:, (2 + rank) * Cout:(3 + rank) * Cout].reshape(B, Cout, H, W)
    a2 = head[:, (3 + rank) * Cout:(4 + rank) * Cout].reshape(B, Cout, H, W)
    aux_outputs = [a1[:, :, ::2, ::2], a2[:, :, ::4, ::4]]

    return [ssn_out] + aux_outputs


# ----------------------------------------------------------------------------
# Pure-JAX reference (f32) for correctness checking
# ----------------------------------------------------------------------------
def _reference_forward(x, params, cfg):
    B, Cin, H, W = x.shape
    Cout, rank, eps = cfg["out_channels"], cfg["rank"], cfg["epsilon"]
    base, ssn = params["base"], params["ssn"]
    mask = x[:, -1:]                                                # (B,1,H,W)

    def conv1x1(inp, w, b):
        return jnp.einsum("oc,bchw->bohw", w, inp) + b[None, :, None, None]

    feat = jnp.maximum(conv1x1(x, base["w0"], base["b0"]), 0.0)
    mean = conv1x1(feat, ssn["w_mean"], ssn["b_mean"])
    logd = conv1x1(feat, ssn["w_logdiag"], ssn["b_logdiag"])
    fact = conv1x1(feat, ssn["w_factor"], ssn["b_factor"])
    cov_diag = ((jnp.exp(logd) + eps) * mask + eps).reshape(B, -1)
    cov_factor = (fact * mask).reshape(B, rank, -1)
    cov_factor = jnp.transpose(cov_factor, (0, 2, 1))
    aux = [conv1x1(feat[:, :, ::ds, ::ds], wa, ba)
           for ds, (wa, ba) in zip((2, 4), base["aux"])]
    return {"logit_mean": mean, "cov_diag": cov_diag, "cov_factor": cov_factor}, aux


# ----------------------------------------------------------------------------
# Deterministic parameter init (PyTorch 1x1-conv weight layout: (Cout, Cin))
# ----------------------------------------------------------------------------
def init_params(key, in_channels, intermediate_channels, out_channels, rank):
    ks = jax.random.split(key, 6)
    s = 0.1
    base = {
        "w0": s * jax.random.normal(ks[0], (intermediate_channels, in_channels), jnp.float32),
        "b0": jnp.zeros((intermediate_channels,), jnp.float32),
        "aux": [
            (s * jax.random.normal(ks[1], (out_channels, intermediate_channels), jnp.float32),
             jnp.zeros((out_channels,), jnp.float32)),
            (s * jax.random.normal(ks[2], (out_channels, intermediate_channels), jnp.float32),
             jnp.zeros((out_channels,), jnp.float32)),
        ],
    }
    ssn = {
        "w_mean": s * jax.random.normal(ks[3], (out_channels, intermediate_channels), jnp.float32),
        "b_mean": jnp.zeros((out_channels,), jnp.float32),
        "w_logdiag": s * jax.random.normal(ks[4], (out_channels, intermediate_channels), jnp.float32),
        "b_logdiag": jnp.zeros((out_channels,), jnp.float32),
        "w_factor": s * jax.random.normal(ks[5], (rank * out_channels, intermediate_channels), jnp.float32),
        "b_factor": jnp.zeros((rank * out_channels,), jnp.float32),
    }
    return {"base": base, "ssn": ssn}


if __name__ == "__main__":
    # small shapes consistent with the module
    B, C_IN, H, W = 2, 4, 16, 16
    ssn_config = {
        "intermediate_channels": 32,
        "out_channels": 2,
        "dims": 2,
        "rank": 4,
        "diagonal": False,
        "epsilon": 1e-5,
        "return_cpu_dist": False,
    }

    key = jax.random.PRNGKey(0)
    k_x, k_m, k_p = jax.random.split(key, 3)
    img = jax.random.normal(k_x, (B, C_IN - 1, H, W), jnp.float32)
    roi_mask = (jax.random.uniform(k_m, (B, 1, H, W)) > 0.3).astype(jnp.float32)
    x = jnp.concatenate([img, roi_mask], axis=1)          # last channel = ROI mask

    params = init_params(k_p, C_IN, ssn_config["intermediate_channels"],
                         ssn_config["out_channels"], ssn_config["rank"])

    forward = jax.jit(lambda xx, pp: ssn_wrapped_llo_forward(xx, pp, ssn_config))
    outputs = forward(x, params)
    outputs = jax.block_until_ready(outputs)

    # ---- shape / value sanity checks ----
    ssn_out = outputs[0]
    Cout, rank = ssn_config["out_channels"], ssn_config["rank"]
    D = Cout * H * W
    assert ssn_out["logit_mean"].shape == (B, Cout, H, W)
    assert ssn_out["mean_flat"].shape == (B, D)
    assert ssn_out["cov_diag"].shape == (B, D)
    assert ssn_out["cov_factor"].shape == (B, D, rank)
    assert outputs[1].shape == (B, Cout, H // 2, W // 2)
    assert outputs[2].shape == (B, Cout, H // 4, W // 4)
    assert bool(jnp.all(ssn_out["cov_diag"] > 0.0))
    assert bool(jnp.all(jnp.isfinite(ssn_out["cov_factor"])))

    # ---- numerical check against a pure-JAX f32 reference (bf16 MXU tolerance) ----
    ref_ssn, ref_aux = _reference_forward(x, params, ssn_config)
    tol = 5e-2
    assert bool(jnp.max(jnp.abs(ssn_out["logit_mean"] - ref_ssn["logit_mean"])) < tol)
    assert bool(jnp.max(jnp.abs(ssn_out["cov_diag"] - ref_ssn["cov_diag"])) < tol)
    assert bool(jnp.max(jnp.abs(ssn_out["cov_factor"] - ref_ssn["cov_factor"])) < tol)
    assert bool(jnp.max(jnp.abs(outputs[1] - ref_aux[0])) < tol)
    assert bool(jnp.max(jnp.abs(outputs[2] - ref_aux[1])) < tol)

    print("KERNEL_OK")
</pallas_src>

<mosaic_0001>
module attributes {stable_mosaic.version = 11 : i64} {
  func.func @_fused_base_ssn_kernel(%arg0: i32, %arg1: i32, %arg2: memref<1x4x256xf32, #tpu.memory_space<vmem>>, %arg3: memref<32x4xbf16, #tpu.memory_space<vmem>>, %arg4: memref<32x1xf32, #tpu.memory_space<vmem>>, %arg5: memref<16x32xbf16, #tpu.memory_space<vmem>>, %arg6: memref<16x1xf32, #tpu.memory_space<vmem>>, %arg7: memref<1x16x256xf32, #tpu.memory_space<vmem>>) attributes {dimension_semantics = [#tpu.dimension_semantics<parallel>, #tpu.dimension_semantics<parallel>], iteration_bounds = array<i64: 2, 1>, scalar_prefetch = 0 : i64, scratch_operands = 0 : i64, tpu.core_type = #tpu.core_type<tc>, window_params = [{transform_indices = @transform_0, window_bounds = array<i64: 1, 4, 256>}, {pipeline_mode = #tpu.pipeline_mode<synchronous>, transform_indices = @transform_1, window_bounds = array<i64: 32, 4>}, {pipeline_mode = #tpu.pipeline_mode<synchronous>, transform_indices = @transform_2, window_bounds = array<i64: 32, 1>}, {pipeline_mode = #tpu.pipeline_mode<synchronous>, transform_indices = @transform_3, window_bounds = array<i64: 16, 32>}, {pipeline_mode = #tpu.pipeline_mode<synchronous>, transform_indices = @transform_4, window_bounds = array<i64: 16, 1>}, {transform_indices = @transform_5, window_bounds = array<i64: 1, 16, 256>}]} {
    %c0 = arith.constant 0 : index
    %c0_0 = arith.constant 0 : index
    %c0_1 = arith.constant 0 : index
    %0 = vector.load %arg2[%c0, %c0_0, %c0_1] : memref<1x4x256xf32, #tpu.memory_space<vmem>>, vector<1x4x256xf32>
    %1 = vector.shape_cast %0 : vector<1x4x256xf32> to vector<4x256xf32>
    %2 = vector.extract_strided_slice %1 {offsets = [3, 0], sizes = [1, 256], strides = [1, 1]} : vector<4x256xf32> to vector<1x256xf32>
    %c0_2 = arith.constant 0 : index
    %c0_3 = arith.constant 0 : index
    %3 = vector.load %arg3[%c0_2, %c0_3] : memref<32x4xbf16, #tpu.memory_space<vmem>>, vector<32x4xbf16>
    %4 = arith.truncf %1 : vector<4x256xf32> to vector<4x256xbf16>
    %cst = arith.constant dense<0.000000e+00> : vector<32x256xf32>
    %5 = tpu.matmul %3, %4, %cst {dimension_numbers = #tpu.dot_dimension_numbers<[1], [0], [0], [1], [0, 0, 1, 1], [], []>} : vector<32x4xbf16>, vector<4x256xbf16>, vector<32x256xf32> -> vector<32x256xf32>
    %c0_4 = arith.constant 0 : index
    %c0_5 = arith.constant 0 : index
    %6 = vector.load %arg4[%c0_4, %c0_5] : memref<32x1xf32, #tpu.memory_space<vmem>>, vector<32x1xf32>
    %7 = vector.broadcast %6 : vector<32x1xf32> to vector<32x256xf32>
    %8 = arith.addf %5, %7 : vector<32x256xf32>
    %cst_6 = arith.constant 0.000000e+00 : f32
    %9 = vector.broadcast %cst_6 : f32 to vector<32x256xf32>
    %10 = arith.maximumf %8, %9 : vector<32x256xf32>
    %c0_7 = arith.constant 0 : index
    %c0_8 = arith.constant 0 : index
    %11 = vector.load %arg5[%c0_7, %c0_8] : memref<16x32xbf16, #tpu.memory_space<vmem>>, vector<16x32xbf16>
    %12 = arith.truncf %10 : vector<32x256xf32> to vector<32x256xbf16>
    %cst_9 = arith.constant dense<0.000000e+00> : vector<16x256xf32>
    %13 = tpu.matmul %11, %12, %cst_9 {dimension_numbers = #tpu.dot_dimension_numbers<[1], [0], [0], [1], [0, 0, 1, 1], [], []>} : vector<16x32xbf16>, vector<32x256xbf16>, vector<16x256xf32> -> vector<16x256xf32>
    %c0_10 = arith.constant 0 : index
    %c0_11 = arith.constant 0 : index
    %14 = vector.load %arg6[%c0_10, %c0_11] : memref<16x1xf32, #tpu.memory_space<vmem>>, vector<16x1xf32>
    %15 = vector.broadcast %14 : vector<16x1xf32> to vector<16x256xf32>
    %16 = arith.addf %13, %15 : vector<16x256xf32>
    %17 = tpu.iota {dimensions = array<i32: 0>} : vector<16x1xi32>
    %c2_i32 = arith.constant 2 : i32
    %18 = vector.broadcast %c2_i32 : i32 to vector<16x1xi32>
    %19 = arith.cmpi sge, %17, %18 : vector<16x1xi32>
    %c4_i32 = arith.constant 4 : i32
    %20 = vector.broadcast %c4_i32 : i32 to vector<16x1xi32>
    %21 = arith.cmpi slt, %17, %20 : vector<16x1xi32>
    %22 = arith.andi %19, %21 : vector<16x1xi1>
    %c4_i32_12 = arith.constant 4 : i32
    %23 = vector.broadcast %c4_i32_12 : i32 to vector<16x1xi32>
    %24 = arith.cmpi sge, %17, %23 : vector<16x1xi32>
    %c12_i32 = arith.constant 12 : i32
    %25 = vector.broadcast %c12_i32 : i32 to vector<16x1xi32>
    %26 = arith.cmpi slt, %17, %25 : vector<16x1xi32>
    %27 = arith.andi %24, %26 : vector<16x1xi1>
    %28 = math.exp %16 : vector<16x256xf32>
    %cst_13 = arith.constant 9.99999974E-6 : f32
    %29 = vector.broadcast %cst_13 : f32 to vector<16x256xf32>
    %30 = arith.addf %28, %29 : vector<16x256xf32>
    %31 = vector.broadcast %2 : vector<1x256xf32> to vector<16x256xf32>
    %32 = arith.mulf %30, %31 : vector<16x256xf32>
    %cst_14 = arith.constant 9.99999974E-6 : f32
    %33 = vector.broadcast %cst_14 : f32 to vector<16x256xf32>
    %34 = arith.addf %32, %33 : vector<16x256xf32>
    %35 = vector.broadcast %2 : vector<1x256xf32> to vector<16x256xf32>
    %36 = arith.mulf %16, %35 : vector<16x256xf32>
    %37 = vector.shape_cast %27 : vector<16x1xi1> to vector<16x1xi1>
    %38 = vector.broadcast %37 : vector<16x1xi1> to vector<16x256xi1>
    %39 = arith.select %38, %36, %16 : vector<16x256xi1>, vector<16x256xf32>
    %40 = vector.shape_cast %22 : vector<16x1xi1> to vector<16x1xi1>
    %41 = vector.broadcast %40 : vector<16x1xi1> to vector<16x256xi1>
    %42 = arith.select %41, %34, %39 : vector<16x256xi1>, vector<16x256xf32>
    %c0_15 = arith.constant 0 : index
    %c0_16 = arith.constant 0 : index
    %c0_17 = arith.constant 0 : index
    %43 = vector.load %arg7[%c0_15, %c0_16, %c0_17] : memref<1x16x256xf32, #tpu.memory_space<vmem>>, vector<1x16x256xf32>
    %44 = vector.shape_cast %43 : vector<1x16x256xf32> to vector<16x256xf32>
    %45 = vector.shape_cast %42 : vector<16x256xf32> to vector<1x16x256xf32>
    tpu.vector_store %arg7[%c0_15, %c0_16, %c0_17], %45 {strides = array<i32>} : memref<1x16x256xf32, #tpu.memory_space<vmem>>, vector<1x16x256xf32>,
    return
  }
  func.func @transform_0(%arg0: i32, %arg1: i32) -> (i32, i32, i32) {
    %c0_i32 = arith.constant 0 : i32
    %c0_i32_0 = arith.constant 0 : i32
    return %arg0, %c0_i32, %arg1 : i32, i32, i32
  }
  func.func @transform_1(%arg0: i32, %arg1: i32) -> (i32, i32) {
    %c0_i32 = arith.constant 0 : i32
    %c0_i32_0 = arith.constant 0 : i32
    %c0_i32_1 = arith.constant 0 : i32
    return %c0_i32, %c0_i32_0 : i32, i32
  }
  func.func @transform_2(%arg0: i32, %arg1: i32) -> (i32, i32) {
    %c0_i32 = arith.constant 0 : i32
    %c0_i32_0 = arith.constant 0 : i32
    %c0_i32_1 = arith.constant 0 : i32
    return %c0_i32, %c0_i32_0 : i32, i32
  }
  func.func @transform_3(%arg0: i32, %arg1: i32) -> (i32, i32) {
    %c0_i32 = arith.constant 0 : i32
    %c0_i32_0 = arith.constant 0 : i32
    %c0_i32_1 = arith.constant 0 : i32
    return %c0_i32, %c0_i32_0 : i32, i32
  }
  func.func @transform_4(%arg0: i32, %arg1: i32) -> (i32, i32) {
    %c0_i32 = arith.constant 0 : i32
    %c0_i32_0 = arith.constant 0 : i32
    %c0_i32_1 = arith.constant 0 : i32
    return %c0_i32, %c0_i32_0 : i32, i32
  }
  func.func @transform_5(%arg0: i32, %arg1: i32) -> (i32, i32, i32) {
    %c0_i32 = arith.constant 0 : i32
    %c0_i32_0 = arith.constant 0 : i32
    return %arg0, %c0_i32, %arg1 : i32, i32, i32
  }
}

</mosaic_0001>

<llo_original>
// kernel: _lambda_.1
$region0: #{_lambda_.1}
  #allocation0 [shape = 'u32[]', space=smem, size = 0x4, offset = 0x4, fixed_abs, tag = 'smem constant byte address 0x4 - core index']
  #allocation1 [shape = 'u32[144,128]{1,0:T(1,128)}', space=vmem, size = 0x12000, scoped, tag = 'internal scratch']
  %s0 = inlined_call_operand.vmem [shape: f32[2,4,256], index: 0, kind: input, shape index: {}]
  %s1 = inlined_call_operand.vmem [shape: bf16[32,4], index: 1, kind: input, shape index: {}]
  %s2 = inlined_call_operand.vmem [shape: f32[32,1], index: 2, kind: input, shape index: {}]
  %s3 = inlined_call_operand.vmem [shape: bf16[16,32], index: 3, kind: input, shape index: {}]
  %s4 = inlined_call_operand.vmem [shape: f32[16,1], index: 4, kind: input, shape index: {}]
  %s5 = inlined_call_operand.vmem [shape: f32[2,16,256], index: 5, kind: output, shape index: {}]
  %s6 = sld [smem:[#allocation0]]
  $region53: #{_lambda_.1} parent=0
    _
  %s8 = ssub.s32 1, %s6
  %s9 = scalar_select 0, %s8, %s6
  loop: start=0, step=1, limit=4
  $region2: #{_lambda_.1} parent=0 // loop_pre_header
    _
  $region3: #{_lambda_.1} parent=0 // loop_header
    %s11 = sphi 0, %s15
    %p12 = scmp.ge.s32.totalorder %s11, 4
    %s18 = sphi 0, %s30
    %s19 = sphi 0, %s26
    %s20 = sphi 0, %s18
    %s21 = sphi 0, %s19
    %s22 = sphi 0, %s20
    %s23 = sphi 0, %s21
    %s35 = sphi 0, %s37
    %s38 = sphi 0, %s35
    %s39 = sphi 0, %s38
    %s55 = sphi 0, %s39
    %s59 = sphi 0, %s59
    %s61 = sphi 0, %s59
    %s62 = sphi 0, %s61
    %s76 = sphi 0, %s62
    %s80 = sphi 0, %s80
    %s82 = sphi 0, %s80
    %s83 = sphi 0, %s82
    %s97 = sphi 0, %s83
    %s101 = sphi 0, %s101
    %s103 = sphi 0, %s101
    %s104 = sphi 0, %s103
    %s118 = sphi 0, %s104
    %s122 = sphi 0, %s122
    %s124 = sphi 0, %s122
    %s125 = sphi 0, %s124
    %s139 = sphi 0, %s125
    %s147 = sphi 0, %s149
    %s150 = sphi 0, %s147
    %s151 = sphi 0, %s150
    %s167 = sphi 0, %s151
  $region4: #{_lambda_.1} parent=0 // loop_header_branch
    %14 = sbr.rel (%p12) target = $region8
  $region5: #{_lambda_.1} parent=0 // loop_body
    %s16 = ssub.s32 %s11, 1
    %s17 = ssub.s32 %s11, 2
    %s24 = sadd.s32 1, %s19
    %p25 = scmp.ge.s32.totalorder %s24, 1
    %s26 = scalar_select %p25, 0, %s24
    %s27 = sadd.s32 1, %s18
    %s28 = scalar_select %p25, %s27, %s18
    %p29 = scmp.ge.s32.totalorder %s28, 2
    %s30 = scalar_select %p29, 0, %s28
    %s31 = ssub.s32 %s18, %s30
    %s32 = ssub.s32 %s19, %s26
    %s33 = sor.u32 %s31, %s32
    %p34 = scmp.eq.s32.totalorder %s33, 0
    %s36 = sadd.s32 %s35, 1
    %s37 = scalar_select %p34, %s35, %s36
    %p40 = pneg %p34
    %p41 = scmp.eq.s32.totalorder %s11, 1
    %p42 = por %p40, %p41
    %p43 = scmp.ne.s32.totalorder %s35, %s38
    %p44 = scmp.eq.s32.totalorder %s11, 0
    %p45 = por %p43, %p44
    %p46 = scmp.ne.s32.totalorder %s35, %s38
    %p47 = scmp.eq.s32.totalorder %s16, 1
    %p48 = por %p46, %p47
    %p49 = scmp.ne.s32.totalorder %s38, %s39
    %p50 = scmp.eq.s32.totalorder %s16, 0
    %p51 = por %p49, %p50
    %p52 = scmp.ne.s32.totalorder %s38, %s39
    %p53 = scmp.eq.s32.totalorder %s17, 1
    %p54 = por %p52, %p53
    %p56 = scmp.ne.s32.totalorder %s39, %s55
    %p57 = scmp.eq.s32.totalorder %s17, 0
    %p58 = por %p56, %p57
    %s60 = sadd.s32 %s59, 1
    %p63 = scmp.eq.s32.totalorder %s11, 1
    %p64 = scmp.ne.s32.totalorder %s59, %s61
    %p65 = scmp.eq.s32.totalorder %s11, 0
    %p66 = por %p64, %p65
    %p67 = scmp.ne.s32.totalorder %s59, %s61
    %p68 = scmp.eq.s32.totalorder %s16, 1
    %p69 = por %p67, %p68
    %p70 = scmp.ne.s32.totalorder %s61, %s62
    %p71 = scmp.eq.s32.totalorder %s16, 0
    %p72 = por %p70, %p71
    %p73 = scmp.ne.s32.totalorder %s61, %s62
    %p74 = scmp.eq.s32.totalorder %s17, 1
    %p75 = por %p73, %p74
    %p77 = scmp.ne.s32.totalorder %s62, %s76
    %p78 = scmp.eq.s32.totalorder %s17, 0
    %p79 = por %p77, %p78
    %s81 = sadd.s32 %s80, 1
    %p84 = scmp.eq.s32.totalorder %s11, 1
    %p85 = scmp.ne.s32.totalorder %s80, %s82
    %p86 = scmp.eq.s32.totalorder %s11, 0
    %p87 = por %p85, %p86
    %p88 = scmp.ne.s32.totalorder %s80, %s82
    %p89 = scmp.eq.s32.totalorder %s16, 1
    %p90 = por %p88, %p89
    %p91 = scmp.ne.s32.totalorder %s82, %s83
    %p92 = scmp.eq.s32.totalorder %s16, 0
    %p93 = por %p91, %p92
    %p94 = scmp.ne.s32.totalorder %s82, %s83
    %p95 = scmp.eq.s32.totalorder %s17, 1
    %p96 = por %p94, %p95
    %p98 = scmp.ne.s32.totalorder %s83, %s97
    %p99 = scmp.eq.s32.totalorder %s17, 0
    %p100 = por %p98, %p99
    %s102 = sadd.s32 %s101, 1
    %p105 = scmp.eq.s32.totalorder %s11, 1
    %p106 = scmp.ne.s32.totalorder %s101, %s103
    %p107 = scmp.eq.s32.totalorder %s11, 0
    %p108 = por %p106, %p107
    %p109 = scmp.ne.s32.totalorder %s101, %s103
    %p110 = scmp.eq.s32.totalorder %s16, 1
    %p111 = por %p109, %p110
    %p112 = scmp.ne.s32.totalorder %s103, %s104
    %p113 = scmp.eq.s32.totalorder %s16, 0
    %p114 = por %p112, %p113
    %p115 = scmp.ne.s32.totalorder %s103, %s104
    %p116 = scmp.eq.s32.totalorder %s17, 1
    %p117 = por %p115, %p116
    %p119 = scmp.ne.s32.totalorder %s104, %s118
    %p120 = scmp.eq.s32.totalorder %s17, 0
    %p121 = por %p119, %p120
    %s123 = sadd.s32 %s122, 1
    %p126 = scmp.eq.s32.totalorder %s11, 1
    %p127 = scmp.ne.s32.totalorder %s122, %s124
    %p128 = scmp.eq.s32.totalorder %s11, 0
    %p129 = por %p127, %p128
    %p130 = scmp.ne.s32.totalorder %s122, %s124
    %p131 = scmp.eq.s32.totalorder %s16, 1
    %p132 = por %p130, %p131
    %p133 = scmp.ne.s32.totalorder %s124, %s125
    %p134 = scmp.eq.s32.totalorder %s16, 0
    %p135 = por %p133, %p134
    %p136 = scmp.ne.s32.totalorder %s124, %s125
    %p137 = scmp.eq.s32.totalorder %s17, 1
    %p138 = por %p136, %p137
    %p140 = scmp.ne.s32.totalorder %s125, %s139
    %p141 = scmp.eq.s32.totalorder %s17, 0
    %p142 = por %p140, %p141
    %s143 = ssub.s32 %s18, %s30
    %s144 = ssub.s32 %s19, %s26
    %s145 = sor.u32 %s143, %s144
    %p146 = scmp.eq.s32.totalorder %s145, 0
    %s148 = sadd.s32 %s147, 1
    %s149 = scalar_select %p146, %s147, %s148
    %p152 = pneg %p146
    %p153 = scmp.eq.s32.totalorder %s11, 1
    %p154 = por %p152, %p153
    %p155 = scmp.ne.s32.totalorder %s147, %s150
    %p156 = scmp.eq.s32.totalorder %s11, 0
    %p157 = por %p155, %p156
    %p158 = scmp.ne.s32.totalorder %s147, %s150
    %p159 = scmp.eq.s32.totalorder %s16, 1
    %p160 = por %p158, %p159
    %p161 = scmp.ne.s32.totalorder %s150, %s151
    %p162 = scmp.eq.s32.totalorder %s16, 0
    %p163 = por %p161, %p162
    %p164 = scmp.ne.s32.totalorder %s150, %s151
    %p165 = scmp.eq.s32.totalorder %s17, 1
    %p166 = por %p164, %p165
    %p168 = scmp.ne.s32.totalorder %s151, %s167
    %p169 = scmp.eq.s32.totalorder %s17, 0
    %p170 = por %p168, %p169
    %p171 = scmp.le.s32.totalorder 1, %s11
    %p172 = scmp.lt.s32.totalorder %s11, 3
    %p173 = pnand %p171, %p172
    %p174 = pneg %p173
    // Predicated region
    $region9: #{_lambda_.1} parent=5 // pred_check
      _
    $region10: #{_lambda_.1} parent=5 // pred_check_branch
      %176 = sbr.rel (%p173) target = $region12
    $region11: #{_lambda_.1} parent=5 // pred_region
      %s177 = ssub.s32 %s11, 1
      // Predicated region
      $region13: #{_lambda_.1} parent=11 // pred_check
        %p178 = pneg %p72
      $region14: #{_lambda_.1} parent=11 // pred_check_branch
        %180 = sbr.rel (%p178) target = $region16
      $region15: #{_lambda_.1} parent=11 // pred_region
        _
      $region16: #{_lambda_.1} parent=11 // pred_fallthru
        _
      // Predicated region
      $region17: #{_lambda_.1} parent=11 // pred_check
        %p181 = pneg %p93
      $region18: #{_lambda_.1} parent=11 // pred_check_branch
        %183 = sbr.rel (%p181) target = $region20
      $region19: #{_lambda_.1} parent=11 // pred_region
        _
      $region20: #{_lambda_.1} parent=11 // pred_fallthru
        _
      // Predicated region
      $region21: #{_lambda_.1} parent=11 // pred_check
        %p184 = pneg %p114
      $region22: #{_lambda_.1} parent=11 // pred_check_branch
        %186 = sbr.rel (%p184) target = $region24
      $region23: #{_lambda_.1} parent=11 // pred_region
        _
      $region24: #{_lambda_.1} parent=11 // pred_fallthru
        _
      // Predicated region
      $region25: #{_lambda_.1} parent=11 // pred_check
        %p187 = pneg %p135
      $region26: #{_lambda_.1} parent=11 // pred_check_branch
        %189 = sbr.rel (%p187) target = $region28
      $region27: #{_lambda_.1} parent=11 // pred_region
        _
      $region28: #{_lambda_.1} parent=11 // pred_fallthru
        _
    $region12: #{_lambda_.1} parent=5 // pred_fallthru
      _
    %p190 = scmp.lt.s32.totalorder %s11, 2
    // Predicated region
    $region29: #{_lambda_.1} parent=5 // pred_check
      %p191 = pneg %p190
    $region30: #{_lambda_.1} parent=5 // pred_check_branch
      %193 = sbr.rel (%p191) target = $region32
    $region31: #{_lambda_.1} parent=5 // pred_region
      // Predicated region
      $region33: #{_lambda_.1} parent=31 // pred_check
        %p194 = pneg %p45
      $region34: #{_lambda_.1} parent=31 // pred_check_branch
        %196 = sbr.rel (%p194) target = $region36
      $region35: #{_lambda_.1} parent=31 // pred_region
        %s197 = smul.u32 2, %s19
        %p198 = scmp.lt.s32.totalorder %s18, 1
        %s199 = scalar_select %p198, %s18, 1
        %p200 = scmp.lt.s32.totalorder %s197, 1
        %s201 = scalar_select %p200, %s197, 1
        %s202 = smul.addr %s199, 2
        %s203 = sadd.s32 %s201, %s202
        %s204 = smul.addr %s203, 4
        %s205 = scalar_lea.vmem %s0, %s204
        %s206 = smul.u32 2, %s19
      $region36: #{_lambda_.1} parent=31 // pred_fallthru
        _
    $region32: #{_lambda_.1} parent=5 // pred_fallthru
      _
    %p207 = scmp.le.s32.totalorder 1, %s11
    %p208 = scmp.lt.s32.totalorder %s11, 3
    %p209 = pnand %p207, %p208
    %p210 = pneg %p209
    // Predicated region
    $region37: #{_lambda_.1} parent=5 // pred_check
      _
    $region38: #{_lambda_.1} parent=5 // pred_check_branch
      %212 = sbr.rel (%p209) target = $region40
    $region39: #{_lambda_.1} parent=5 // pred_region
      %s213 = ssub.s32 %s11, 1
      %s214 = smul.u32 2, %s21
      %p215 = scmp.lt.s32.totalorder %s20, 1
      %s216 = scalar_select %p215, %s20, 1
      %p217 = scmp.lt.s32.totalorder %s214, 1
      %s218 = scalar_select %p217, %s214, 1
      %s219 = smul.addr %s216, 2
      %s220 = sadd.s32 %s218, %s219
      %s221 = smul.addr %s220, 4
      %s222 = scalar_lea.vmem %s0, %s221
      %p223 = pneg %p51
      %p224 = pneg %p48
      %p225 = pneg %p72
      %p226 = pneg %p69
      %p227 = pneg %p93
      %p228 = pneg %p90
      %p229 = pneg %p114
      %p230 = pneg %p111
      %p231 = pneg %p135
      %p232 = pneg %p132
      %p233 = pneg %p163
      %p234 = pneg %p160
      %s235 = smul.u32 2, %s21
      %p236 = scmp.lt.s32.totalorder %s20, 1
      %s237 = scalar_select %p236, %s20, 1
      %p238 = scmp.lt.s32.totalorder %s235, 1
      %s239 = scalar_select %p238, %s235, 1
      %s240 = smul.addr %s237, 4
      %s241 = sadd.s32 %s239, %s240
      %s242 = smul.addr %s241, 8
      %s243 = scalar_lea.vmem %s5, %s242
      %s244 = smul.u32 2, %s21
      %p245 = scmp.lt.s32.totalorder %s20, 1
      %s246 = scalar_select %p245, %s20, 1
      %p247 = scmp.lt.s32.totalorder %s244, 1
      %s248 = scalar_select %p247, %s244, 1
      %s249 = smul.addr %s246, 2
      %s250 = sadd.s32 %s248, %s249
      %s251 = smul.addr %s250, 4
      %s252 = scalar_lea.vmem %s0, %s251
      %s253 = smul.u32 2, %s21
      %s254 = smul.u32 2, %s21
      %p255 = scmp.lt.s32.totalorder %s20, 1
      %s256 = scalar_select %p255, %s20, 1
      %p257 = scmp.lt.s32.totalorder %s254, 1
      %s258 = scalar_select %p257, %s254, 1
      %s259 = smul.addr %s256, 4
      %s260 = sadd.s32 %s258, %s259
      %s261 = smul.addr %s260, 8
      %s262 = scalar_lea.vmem %s5, %s261
      %s263 = smul.u32 2, %s21
      %v265 = vld [vmem:[%s252] sm:$0xff]
      %v266 = vld [vmem:[%s1] sm:$0xf]
      %v267 = vld [vmem:[%s1 + $0x4] sm:$0xf]
      %v268 = vld [vmem:[%s1 + $0x8] sm:$0xf]
      %v269 = vld [vmem:[%s1 + $0xc] sm:$0xf]
      %v271 = vcombine.high %v265, %v265
      %v273 = vpack.c.bf16 %v265, %v265
      %v274 = vpack.c.bf16 %v271, %v271
      %v275 = vld [vmem:[%s2] sm:$0xff]
      %v276 = vld [vmem:[%s2 + $0x8] sm:$0xff]
      %v277 = vld [vmem:[%s2 + $0x10] sm:$0xff]
      %v278 = vld [vmem:[%s2 + $0x18] sm:$0xff]
      %280 = vset.pattern.permute.xlu0 0
      %281 = vperm.xlu0 %280, %v275
      %v282 = vpop.permute.xlu0 %281
      %285 = vset.pattern.permute.xlu0 0
      %286 = vperm.xlu0 %285, %v276
      %v287 = vpop.permute.xlu0 %286
      %290 = vset.pattern.permute.xlu0 0
      %291 = vperm.xlu0 %290, %v277
      %v292 = vpop.permute.xlu0 %291
      %295 = vset.pattern.permute.xlu0 0
      %296 = vperm.xlu0 %295, %v278
      %v297 = vpop.permute.xlu0 %296
      %v303 = vunpack.c.l.b16 %v266
      %v304 = vunpack.c.l.b16 %v267
      %v305 = vunpack.c.l.b16 %v268
      %v306 = vunpack.c.l.b16 %v269
      %v307 = vpack.c.b16 %v304, %v303
      %v308 = vpack.c.b16 %v306, %v305
      %vm309 = vcmask 31744
      %v311 = vsel %vm309, %v307, 0
      %v314 = vsel %vm309, %v308, 0
      %vm316 = vcmask 1041408
      %v318 = vsel %vm316, %v273, 0
      %v321 = vsel %vm316, %v274, 0
      %323 = vmatprep.subr.bf16.mxu0 %v321
      %324 = vmatpush1.bf16.msra.mxu0 %v318
      %325 = vmatprep.subr.bf16.mxu0 0
      %326 = vmatpush1.bf16.msra.mxu0 0
      %327 = vmatprep.subr.bf16.mxu0 0
      %328 = vmatpush1.bf16.msra.mxu0 0
      %329 = vmatprep.subr.bf16.mxu0 0
      %330 = vmatpush1.bf16.msra.mxu0 0
      %331 = vmatprep.subr.bf16.mxu0 0
      %332 = vmatpush1.bf16.msra.mxu0 0
      %333 = vmatprep.subr.bf16.mxu0 0
      %334 = vmatpush1.bf16.msra.mxu0 0
      %335 = vmatprep.subr.bf16.mxu0 0
      %336 = vmatpush1.bf16.msra.mxu0 0
      %337 = vmatprep.subr.bf16.mxu0 0
      %338 = vmatpush1.bf16.msra.mxu0 0
      %339 = vmatprep.subr.bf16.mxu0 0
      %340 = vmatpush1.bf16.msra.mxu0 0
      %341 = vmatprep.subr.bf16.mxu0 0
      %342 = vmatpush1.bf16.msra.mxu0 0
      %343 = vmatprep.subr.bf16.mxu0 0
      %344 = vmatpush1.bf16.msra.mxu0 0
      %345 = vmatprep.subr.bf16.mxu0 0
      %346 = vmatpush1.bf16.msra.mxu0 0
      %347 = vmatprep.subr.bf16.mxu0 0
      %348 = vmatpush1.bf16.msra.mxu0 0
      %349 = vmatprep.subr.bf16.mxu0 0
      %350 = vmatpush1.bf16.msra.mxu0 0
      %351 = vmatprep.subr.bf16.mxu0 0
      %352 = vmatpush1.bf16.msra.mxu0 0
      %353 = vmatprep.subr.bf16.mxu0 0
      %354 = vmatpush1.bf16.msra.mxu0 0
      %355 = vmatprep.mubr.bf16.mxu0 0
      %356 = vmatmul.mubr.bf16.gmra.mrb[0].mxu0 %v311
      %v357 = vpop.f32.mrb[0].mxu0
      %v358 = vadd.f32 %v282, %v357
      %v359 = vpop.f32.mrb[0].mxu0
      %v360 = vadd.f32 %v282, %v359
      %v361 = vpop.f32.mrb[0].mxu0
      %v362 = vadd.f32 %v287, %v361
      %v363 = vpop.f32.mrb[0].mxu0
      %v364 = vadd.f32 %v287, %v363
      %365 = vmatprep.mubr.bf16.mxu0 0
      %366 = vmatmul.mubr.bf16.gmra.mrb[0].mxu0 %v314
      %v367 = vpop.f32.mrb[0].mxu0
      %v368 = vadd.f32 %v292, %v367
      %v369 = vpop.f32.mrb[0].mxu0
      %v370 = vadd.f32 %v292, %v369
      %v371 = vpop.f32.mrb[0].mxu0
      %v372 = vadd.f32 %v297, %v371
      %v373 = vpop.f32.mrb[0].mxu0
      %v374 = vadd.f32 %v297, %v373
      %375 = vdwg.mxu0
      %v376 = vmax.f32 %v358, 0.0
      %v377 = vmax.f32 %v360, 0.0
      %v378 = vmax.f32 %v362, 0.0
      %v379 = vmax.f32 %v364, 0.0
      %v380 = vmax.f32 %v368, 0.0
      %v381 = vmax.f32 %v370, 0.0
      %v382 = vmax.f32 %v372, 0.0
      %v383 = vmax.f32 %v374, 0.0
      %v384 = vld [vmem:[%s3] sm:$0xf]
      %v385 = vld [vmem:[%s3 + $0x4] sm:$0xf]
      %v386 = vpack.c.bf16 %v378, %v376
      %v387 = vpack.c.bf16 %v379, %v377
      %v388 = vpack.c.bf16 %v382, %v380
      %v389 = vpack.c.bf16 %v383, %v381
      %v390 = vld [vmem:[%s4] sm:$0xff]
      %v391 = vld [vmem:[%s4 + $0x8] sm:$0xff]
      %393 = vset.pattern.permute.xlu0 0
      %394 = vperm.xlu0 %393, %v390
      %v395 = vpop.permute.xlu0 %394
      %398 = vset.pattern.permute.xlu0 0
      %399 = vperm.xlu0 %398, %v391
      %v400 = vpop.permute.xlu0 %399
      %v404 = vunpack.c.l.b16 %v384
      %v405 = vunpack.c.l.b16 %v385
      %v406 = vpack.c.b16 %v405, %v404
      %vm407 = vcmask 261120
      %v409 = vsel %vm407, %v406, 0
      %411 = vmatprep.subr.bf16.mxu0 %v387
      %412 = vmatpush1.bf16.msra.mxu0 %v386
      %413 = vmatprep.subr.bf16.mxu0 %v389
      %414 = vmatpush1.bf16.msra.mxu0 %v388
      %415 = vmatprep.subr.bf16.mxu0 0
      %416 = vmatpush1.bf16.msra.mxu0 0
      %417 = vmatprep.subr.bf16.mxu0 0
      %418 = vmatpush1.bf16.msra.mxu0 0
      %419 = vmatprep.subr.bf16.mxu0 0
      %420 = vmatpush1.bf16.msra.mxu0 0
      %421 = vmatprep.subr.bf16.mxu0 0
      %422 = vmatpush1.bf16.msra.mxu0 0
      %423 = vmatprep.subr.bf16.mxu0 0
      %424 = vmatpush1.bf16.msra.mxu0 0
      %425 = vmatprep.subr.bf16.mxu0 0
      %426 = vmatpush1.bf16.msra.mxu0 0
      %427 = vmatprep.subr.bf16.mxu0 0
      %428 = vmatpush1.bf16.msra.mxu0 0
      %429 = vmatprep.subr.bf16.mxu0 0
      %430 = vmatpush1.bf16.msra.mxu0 0
      %431 = vmatprep.subr.bf16.mxu0 0
      %432 = vmatpush1.bf16.msra.mxu0 0
      %433 = vmatprep.subr.bf16.mxu0 0
      %434 = vmatpush1.bf16.msra.mxu0 0
      %435 = vmatprep.subr.bf16.mxu0 0
      %436 = vmatpush1.bf16.msra.mxu0 0
      %437 = vmatprep.subr.bf16.mxu0 0
      %438 = vmatpush1.bf16.msra.mxu0 0
      %439 = vmatprep.subr.bf16.mxu0 0
      %440 = vmatpush1.bf16.msra.mxu0 0
      %441 = vmatprep.subr.bf16.mxu0 0
      %442 = vmatpush1.bf16.msra.mxu0 0
      %443 = vmatprep.mubr.bf16.mxu0 0
      %444 = vmatmul.mubr.bf16.gmra.mrb[0].mxu0 %v409
      %v445 = vpop.f32.mrb[0].mxu0
      %v446 = vadd.f32 %v395, %v445
      %v447 = vpop.f32.mrb[0].mxu0
      %v448 = vadd.f32 %v395, %v447
      %v449 = vpop.f32.mrb[0].mxu0
      %v450 = vadd.f32 %v400, %v449
      %v451 = vpop.f32.mrb[0].mxu0
      %v452 = vadd.f32 %v400, %v451
      %453 = vdwg.mxu0
      %v454 = vlaneseq
      %v455 = vshrl.u32 %v454, 7
      %v456 = vadd.s32 %v455, 8
      %vm457 = vcmp.ge.s32.totalorder %v455, 2
      %vm458 = vcmp.ge.s32.totalorder %v456, 2
      %vm459 = vcmp.lt.s32.totalorder %v455, 4
      %vm460 = vcmp.lt.s32.totalorder %v456, 4
      %vm461 = vmand %vm457, %vm459
      %vm462 = vmand %vm458, %vm460
      %vm463 = vcmp.ge.s32.totalorder %v455, 4
      %vm464 = vcmp.ge.s32.totalorder %v456, 4
      %vm465 = vcmp.lt.s32.totalorder %v455, 12
      %vm466 = vcmp.lt.s32.totalorder %v456, 12
      %vm467 = vmand %vm463, %vm465
      %vm468 = vmand %vm464, %vm466
      %v469 = vmul.f32 %v446, 1.442695
      %v470 = vpow.pop %v469
      %v471 = vmul.f32 %v448, 1.442695
      %v472 = vpow.pop %v471
      %v473 = vmul.f32 %v450, 1.442695
      %v474 = vpow.pop %v473
      %v475 = vmul.f32 %v452, 1.442695
      %v476 = vpow.pop %v475
      %v477 = vadd.f32 %v470, 1e-05
      %v478 = vadd.f32 %v472, 1e-05
      %v479 = vadd.f32 %v474, 1e-05
      %v480 = vadd.f32 %v476, 1e-05
      %v481 = vlaneseq
      %v482 = vshrl.u32 %v481, 7
      %v483 = vsub.s32 3, %v482
      %v484 = vrot.slane %v265, %v483
      %v485 = vlaneseq
      %v486 = vshrl.u32 %v485, 7
      %v487 = vsub.s32 7, %v486
      %v488 = vrot.slane %v265, %v487
      %v491 = vlaneseq
      %v492 = vshrl.u32 %v491, 7
      %v493 = vsub.s32 3, %v492
      %v494 = vrot.slane %v484, %v493
      %v495 = vlaneseq
      %v496 = vshrl.u32 %v495, 7
      %v497 = vsub.s32 3, %v496
      %v498 = vrot.slane %v488, %v497
      %v499 = vmul.f32 %v477, %v494
      %v500 = vmul.f32 %v478, %v498
      %v501 = vmul.f32 %v479, %v494
      %v502 = vmul.f32 %v480, %v498
      %v503 = vadd.f32 %v499, 1e-05
      %v504 = vadd.f32 %v500, 1e-05
      %v505 = vadd.f32 %v501, 1e-05
      %v506 = vadd.f32 %v502, 1e-05
      %v507 = vmul.f32 %v446, %v494
      %v508 = vmul.f32 %v448, %v498
      %v509 = vmul.f32 %v450, %v494
      %v510 = vmul.f32 %v452, %v498
      %v511 = vsel %vm467, 1, 0
      %v512 = vsel %vm468, 1, 0
      %vm513 = vcmp.eq.s32.totalorder %v511, 1
      %vm514 = vcmp.eq.s32.totalorder %v512, 1
      %v515 = vsel %vm513, %v507, %v446
      %v516 = vsel %vm513, %v508, %v448
      %v517 = vsel %vm514, %v509, %v450
      %v518 = vsel %vm514, %v510, %v452
      %v519 = vsel %vm461, 1, 0
      %v520 = vsel %vm462, 1, 0
      %vm521 = vcmp.eq.s32.totalorder %v519, 1
      %vm522 = vcmp.eq.s32.totalorder %v520, 1
      %v523 = vsel %vm521, %v503, %v515
      %v524 = vsel %vm521, %v504, %v516
      %v525 = vsel %vm522, %v505, %v517
      %v526 = vsel %vm522, %v506, %v518
      %527 = vst [vmem:[%s262] sm:$0xff] %v523
      %528 = vst [vmem:[%s262 + $0x8] sm:$0xff] %v524
      %529 = vst [vmem:[%s262 + $0x10] sm:$0xff] %v525
      %530 = vst [vmem:[%s262 + $0x18] sm:$0xff] %v526
      %s531 = smul.u32 2, %s21
      %p532 = scmp.lt.s32.totalorder %s20, 1
      %s533 = scalar_select %p532, %s20, 1
      %p534 = scmp.lt.s32.totalorder %s531, 1
      %s535 = scalar_select %p534, %s531, 1
      %s536 = smul.addr %s533, 4
      %s537 = sadd.s32 %s535, %s536
      %s538 = smul.addr %s537, 8
      %s539 = scalar_lea.vmem %s5, %s538
      // Predicated region
      $region41: #{_lambda_.1} parent=39 // pred_check
        %p540 = pneg %p160
      $region42: #{_lambda_.1} parent=39 // pred_check_branch
        %542 = sbr.rel (%p540) target = $region44
      $region43: #{_lambda_.1} parent=39 // pred_region
        %s543 = smul.u32 2, %s21
      $region44: #{_lambda_.1} parent=39 // pred_fallthru
        _
    $region40: #{_lambda_.1} parent=5 // pred_fallthru
      _
    %p544 = scmp.le.s32.totalorder 2, %s11
    // Predicated region
    $region45: #{_lambda_.1} parent=5 // pred_check
      %p545 = pneg %p544
    $region46: #{_lambda_.1} parent=5 // pred_check_branch
      %547 = sbr.rel (%p545) target = $region48
    $region47: #{_lambda_.1} parent=5 // pred_region
      %s548 = ssub.s32 %s11, 2
      // Predicated region
      $region49: #{_lambda_.1} parent=47 // pred_check
        %p549 = pneg %p166
      $region50: #{_lambda_.1} parent=47 // pred_check_branch
        %551 = sbr.rel (%p549) target = $region52
      $region51: #{_lambda_.1} parent=47 // pred_region
        %s552 = smul.u32 2, %s23
        %p553 = scmp.lt.s32.totalorder %s22, 1
        %s554 = scalar_select %p553, %s22, 1
        %p555 = scmp.lt.s32.totalorder %s552, 1
        %s556 = scalar_select %p555, %s552, 1
        %s557 = smul.addr %s554, 4
        %s558 = sadd.s32 %s556, %s557
        %s559 = smul.addr %s558, 8
        %s560 = scalar_lea.vmem %s5, %s559
      $region52: #{_lambda_.1} parent=47 // pred_fallthru
        _
    $region48: #{_lambda_.1} parent=5 // pred_fallthru
      _
  $region6: #{_lambda_.1} parent=0 // loop_footer
    %s15 = sadd.s32 1, %s11
  $region7: #{_lambda_.1} parent=0 // loop_footer_branch
    %10 = sbr.rel target = $region3
  $region8: #{_lambda_.1} parent=0 // loop_exit
    _

</llo_original>
